<compile_context>
chip_gen: v7x
topology: tpu7x:2x2x1
jax: 0.10.0
libtpu: 0.0.40
codegen_flags: <defaults>
</compile_context>

<pallas_src>
import jax
import jax.numpy as jnp
import numpy as np
from jax.experimental import pallas as pl
from jax.experimental.pallas import tpu as pltpu


# ---------------------------------------------------------------------------
# Small stand-in configuration (module defaults are in_dim=256, inner=4096,
# out=256; the forward implies seqlen == 21 so that seqlen*feat == in_dim*21).
# ---------------------------------------------------------------------------
B = 2
SEQLEN = 21
IN_DIM = 32
K_FLAT = SEQLEN * IN_DIM        # 672  (= in_dim * 21)
INNER = 128                     # inner_linear_dim (multiple of 128 -> lane-dense)
OUT_DIM = 128                   # output_dim       (multiple of 128 -> lane-dense)
NUM_LAYERS = 2
BN_EPS = 1e-5
W_WIDTH = max(INNER, OUT_DIM)   # packed-buffer lane width


# ---------------------------------------------------------------------------
# Fused kernel: whole batch, both Linear layers, ReLU; BN pre-folded.
# ---------------------------------------------------------------------------
def _mlp_kernel(x_ref, w_ref, b_ref, out_ref):
    # x_ref : (B, K_FLAT)            flattened input
    # w_ref : (K_FLAT + INNER, 128)  [W1_folded ; W2] packed along sublanes
    # b_ref : (2, 128)               [b1_folded ; b2]
    # out_ref: (B, OUT_DIM)
    x = x_ref[...]

    # Linear(K_FLAT, INNER) with BN(eval) folded in, then ReLU.
    w1 = w_ref[0:K_FLAT, 0:INNER]
    b1 = b_ref[0:1, 0:INNER]
    h = jnp.dot(x, w1, preferred_element_type=jnp.float32) + b1
    h = jnp.maximum(h, 0.0)

    # linear_out: Linear(INNER, OUT_DIM)
    w2 = w_ref[K_FLAT:K_FLAT + INNER, 0:OUT_DIM]
    b2 = b_ref[1:2, 0:OUT_DIM]
    out = jnp.dot(h, w2, preferred_element_type=jnp.float32) + b2
    out_ref[...] = out.astype(out_ref.dtype)


@jax.jit
def moby_mlp_flattern_forward(x, w_packed, b_packed):
    """x: (B, seqlen, feat) float32 -> (B, OUT_DIM) float32."""
    bsz = x.shape[0]
    x_flat = x.reshape(bsz, -1)     # row-major flatten, matches torch .reshape

    vmem = pl.BlockSpec(memory_space=pltpu.MemorySpace.VMEM)
    return pl.pallas_call(
        _mlp_kernel,
        out_shape=jax.ShapeDtypeStruct((bsz, OUT_DIM), jnp.float32),
        in_specs=[vmem, vmem, vmem],
        out_specs=vmem,
    )(x_flat, w_packed, b_packed)


# ---------------------------------------------------------------------------
# Deterministic parameter construction (matches nn.Module __init__ shapes)
# ---------------------------------------------------------------------------
def init_params(key):
    ks = jax.random.split(key, 8)

    def nrm(k, shape, scale=0.1):
        return jax.random.normal(k, shape, jnp.float32) * scale

    return {
        # nn.Linear(in_dim*21, inner): weight (inner, in_dim*21), bias (inner,)
        "w1": nrm(ks[0], (INNER, K_FLAT)),
        "b1": nrm(ks[1], (INNER,)),
        # nn.BatchNorm1d(inner)
        "gamma": 1.0 + nrm(ks[2], (INNER,)),
        "beta": nrm(ks[3], (INNER,)),
        "mean": nrm(ks[4], (INNER,), 0.05),
        "var": jax.random.uniform(ks[5], (INNER,), jnp.float32, 0.5, 1.5),
        # nn.Linear(inner, out_dim)
        "w2": nrm(ks[6], (OUT_DIM, INNER)),
        "b2": nrm(ks[7], (OUT_DIM,)),
    }


def pack_params(p):
    """Fold BN into Linear1 and pack everything into two buffers."""
    s = p["gamma"] / jnp.sqrt(p["var"] + BN_EPS)
    t = p["beta"] - p["mean"] * s
    w1_eff = p["w1"].T * s[None, :]          # (K_FLAT, INNER)
    b1_eff = p["b1"] * s + t                 # (INNER,)
    w2 = p["w2"].T                           # (INNER, OUT_DIM)
    b2 = p["b2"]                             # (OUT_DIM,)

    def pad_lanes_2d(w):
        return jnp.pad(w, ((0, 0), (0, W_WIDTH - w.shape[1])))

    def pad_lanes_1d(b):
        return jnp.pad(b, (0, W_WIDTH - b.shape[0]))

    w_packed = jnp.concatenate([pad_lanes_2d(w1_eff), pad_lanes_2d(w2)], axis=0)
    b_packed = jnp.stack([pad_lanes_1d(b1_eff), pad_lanes_1d(b2)], axis=0)
    return w_packed, b_packed                # (K_FLAT+INNER, 128), (2, 128)


# ---------------------------------------------------------------------------
# Pure-JAX reference (unfolded BN) for validation
# ---------------------------------------------------------------------------
def reference_forward(x, p):
    xf = x.reshape(x.shape[0], -1)
    h = xf @ p["w1"].T + p["b1"]
    h = (h - p["mean"]) / jnp.sqrt(p["var"] + BN_EPS) * p["gamma"] + p["beta"]
    h = jnp.maximum(h, 0.0)
    return h @ p["w2"].T + p["b2"]


# ---------------------------------------------------------------------------
if __name__ == "__main__":
    key = jax.random.PRNGKey(0)
    k_x, k_p = jax.random.split(key)
    x = jax.random.normal(k_x, (B, SEQLEN, IN_DIM), jnp.float32)

    params = init_params(k_p)
    w_packed, b_packed = pack_params(params)

    out = moby_mlp_flattern_forward(x, w_packed, b_packed)
    jax.block_until_ready(out)

    ref = reference_forward(x, params)
    np.testing.assert_allclose(np.asarray(out), np.asarray(ref),
                               rtol=1e-4, atol=1e-4)
    assert out.shape == (B, OUT_DIM)
    print("KERNEL_OK")
</pallas_src>

<mosaic_0001>
module attributes {stable_mosaic.version = 11 : i64} {
  func.func @_mlp_kernel(%arg0: memref<2x672xf32, #tpu.memory_space<vmem>>, %arg1: memref<800x128xf32, #tpu.memory_space<vmem>>, %arg2: memref<2x128xf32, #tpu.memory_space<vmem>>, %arg3: memref<2x128xf32, #tpu.memory_space<vmem>>) attributes {dimension_semantics = [], scalar_prefetch = 0 : i64, scratch_operands = 0 : i64, tpu.core_type = #tpu.core_type<tc>} {
    %c0 = arith.constant 0 : index
    %c0_0 = arith.constant 0 : index
    %0 = vector.load %arg0[%c0, %c0_0] : memref<2x672xf32, #tpu.memory_space<vmem>>, vector<2x672xf32>
    %c0_1 = arith.constant 0 : index
    %c0_2 = arith.constant 0 : index
    %1 = vector.load %arg1[%c0_1, %c0_2] : memref<800x128xf32, #tpu.memory_space<vmem>>, vector<672x128xf32>
    %c0_3 = arith.constant 0 : index
    %c0_4 = arith.constant 0 : index
    %2 = vector.load %arg2[%c0_3, %c0_4] : memref<2x128xf32, #tpu.memory_space<vmem>>, vector<1x128xf32>
    %cst = arith.constant dense<0.000000e+00> : vector<2x128xf32>
    %3 = tpu.matmul %0, %1, %cst {dimension_numbers = #tpu.dot_dimension_numbers<[1], [0], [0], [1], [0, 0, 1, 1], [], []>} : vector<2x672xf32>, vector<672x128xf32>, vector<2x128xf32> -> vector<2x128xf32>
    %4 = vector.broadcast %2 : vector<1x128xf32> to vector<2x128xf32>
    %5 = arith.addf %3, %4 : vector<2x128xf32>
    %cst_5 = arith.constant 0.000000e+00 : f32
    %6 = vector.broadcast %cst_5 : f32 to vector<2x128xf32>
    %7 = arith.maximumf %5, %6 : vector<2x128xf32>
    %c672 = arith.constant 672 : index
    %c0_6 = arith.constant 0 : index
    %8 = vector.load %arg1[%c672, %c0_6] : memref<800x128xf32, #tpu.memory_space<vmem>>, vector<128x128xf32>
    %c1 = arith.constant 1 : index
    %c0_7 = arith.constant 0 : index
    %9 = vector.load %arg2[%c1, %c0_7] : memref<2x128xf32, #tpu.memory_space<vmem>>, vector<1x128xf32>
    %cst_8 = arith.constant dense<0.000000e+00> : vector<2x128xf32>
    %10 = tpu.matmul %7, %8, %cst_8 {dimension_numbers = #tpu.dot_dimension_numbers<[1], [0], [0], [1], [0, 0, 1, 1], [], []>} : vector<2x128xf32>, vector<128x128xf32>, vector<2x128xf32> -> vector<2x128xf32>
    %11 = vector.broadcast %9 : vector<1x128xf32> to vector<2x128xf32>
    %12 = arith.addf %10, %11 : vector<2x128xf32>
    %c0_9 = arith.constant 0 : index
    %c0_10 = arith.constant 0 : index
    %13 = vector.load %arg3[%c0_9, %c0_10] : memref<2x128xf32, #tpu.memory_space<vmem>>, vector<2x128xf32>
    tpu.vector_store %arg3[%c0_9, %c0_10], %12 {strides = array<i32>} : memref<2x128xf32, #tpu.memory_space<vmem>>, vector<2x128xf32>,
    return
  }
}

</mosaic_0001>

<llo_original>
// kernel: moby_mlp_flattern_forward.1
$region0: #{moby_mlp_flattern_forward.1}
  #allocation0 [shape = 'u32[]', space=smem, size = 0x4, offset = 0x4, fixed_abs, tag = 'smem constant byte address 0x4 - core index']
  #allocation1 [shape = 'u32[144,128]{1,0:T(1,128)}', space=vmem, size = 0x12000, scoped, tag = 'internal scratch']
  %s0 = inlined_call_operand.vmem [shape: f32[2,672], index: 0, kind: input, shape index: {}]
  %s1 = inlined_call_operand.hbm [shape: f32[800,128], index: 1, kind: input, shape index: {}]
  %s2 = inlined_call_operand.vmem [shape: f32[2,128], index: 2, kind: input, shape index: {}]
  %s3 = inlined_call_operand.hbm [shape: f32[2,128], index: 3, kind: output, shape index: {}]
  %s4 = sld [smem:[#allocation0]]
  $region26: #{moby_mlp_flattern_forward.1} parent=0
    _
  %s6 = ssub.s32 1, %s4
  %s7 = scalar_select 0, %s6, %s4
  $region1: #{moby_mlp_flattern_forward.1} parent=0
    #allocation2 [shape = 'u8[409600]{0}', space=vmem, size = 0x64000, scoped, tag = 'input window, operand 1, single buffered']
    #allocation3 [shape = 's32[1]{0}', space=sflag, size = 0x4, scoped, tag = 'scoped memory for moby_mlp_flattern_forward.1']
    #allocation4 [shape = 's32[1]{0}', space=sflag, size = 0x4, scoped, tag = 'scoped memory for moby_mlp_flattern_forward.1']
    #allocation5 [shape = 'u8[1024]{0}', space=vmem, size = 0x400, scoped, tag = 'output window, operand 0, single buffered']
    %8 = vsyncpa [#allocation3], 0
    %9 = vsyncpa [#allocation4], 0
    // Predicated region
    $region2: #{moby_mlp_flattern_forward.1} parent=1 // pred_check
      _
    $region3: #{moby_mlp_flattern_forward.1} parent=1 // pred_check_branch
      %11 = sbr.rel (0) target = $region5
    $region4: #{moby_mlp_flattern_forward.1} parent=1 // pred_region
      _
    $region5: #{moby_mlp_flattern_forward.1} parent=1 // pred_fallthru
      _
    // Predicated region
    $region6: #{moby_mlp_flattern_forward.1} parent=1 // pred_check
      _
    $region7: #{moby_mlp_flattern_forward.1} parent=1 // pred_check_branch
      %13 = sbr.rel (0) target = $region9
    $region8: #{moby_mlp_flattern_forward.1} parent=1 // pred_region
      %s15 = ssub.s32 12800, 12800
      %16 = vsyncadd [#allocation3], %s15
      %s17 = sshll.u32 [#allocation2], 4
      %s18 = int_to_ptr.vmem [resolvable:$true] %s17
      %23 = dma.hbm_to_vmem [thread:$0]  %s1, 12800, %s18, [#allocation3], 128, 128, 8
    $region9: #{moby_mlp_flattern_forward.1} parent=1 // pred_fallthru
      _
    // Predicated region
    $region10: #{moby_mlp_flattern_forward.1} parent=1 // pred_check
      _
    $region11: #{moby_mlp_flattern_forward.1} parent=1 // pred_check_branch
      %25 = sbr.rel (0) target = $region13
    $region12: #{moby_mlp_flattern_forward.1} parent=1 // pred_region
      _
    $region13: #{moby_mlp_flattern_forward.1} parent=1 // pred_fallthru
      _
    // Predicated region
    $region14: #{moby_mlp_flattern_forward.1} parent=1 // pred_check
      _
    $region15: #{moby_mlp_flattern_forward.1} parent=1 // pred_check_branch
      %27 = sbr.rel (0) target = $region17
    $region16: #{moby_mlp_flattern_forward.1} parent=1 // pred_region
      %28 = dma.done [#allocation3], 12800
    $region17: #{moby_mlp_flattern_forward.1} parent=1 // pred_fallthru
      _
    %v29 = vld [vmem:[%s0] sm:$0xff]
    %v30 = vld [vmem:[%s0 + $0x8] sm:$0xf]
    %v31 = vld [vmem:[#allocation2] sm:$0xff]
    %v32 = vld [vmem:[#allocation2 + $0x8] sm:$0xff]
    %v33 = vld [vmem:[#allocation2 + $0x10] sm:$0xff]
    %v34 = vld [vmem:[#allocation2 + $0x18] sm:$0xff]
    %v35 = vld [vmem:[#allocation2 + $0x20] sm:$0xff]
    %v36 = vld [vmem:[#allocation2 + $0x28] sm:$0xff]
    %v37 = vld [vmem:[#allocation2 + $0x30] sm:$0xff]
    %v38 = vld [vmem:[#allocation2 + $0x38] sm:$0xff]
    %v39 = vld [vmem:[#allocation2 + $0x40] sm:$0xff]
    %v40 = vld [vmem:[#allocation2 + $0x48] sm:$0xff]
    %v41 = vld [vmem:[#allocation2 + $0x50] sm:$0xff]
    %v42 = vld [vmem:[#allocation2 + $0x58] sm:$0xff]
    %v43 = vld [vmem:[#allocation2 + $0x60] sm:$0xff]
    %v44 = vld [vmem:[#allocation2 + $0x68] sm:$0xff]
    %v45 = vld [vmem:[#allocation2 + $0x70] sm:$0xff]
    %v46 = vld [vmem:[#allocation2 + $0x78] sm:$0xff]
    %v47 = vld [vmem:[#allocation2 + $0x80] sm:$0xff]
    %v48 = vld [vmem:[#allocation2 + $0x88] sm:$0xff]
    %v49 = vld [vmem:[#allocation2 + $0x90] sm:$0xff]
    %v50 = vld [vmem:[#allocation2 + $0x98] sm:$0xff]
    %v51 = vld [vmem:[#allocation2 + $0xa0] sm:$0xff]
    %v52 = vld [vmem:[#allocation2 + $0xa8] sm:$0xff]
    %v53 = vld [vmem:[#allocation2 + $0xb0] sm:$0xff]
    %v54 = vld [vmem:[#allocation2 + $0xb8] sm:$0xff]
    %v55 = vld [vmem:[#allocation2 + $0xc0] sm:$0xff]
    %v56 = vld [vmem:[#allocation2 + $0xc8] sm:$0xff]
    %v57 = vld [vmem:[#allocation2 + $0xd0] sm:$0xff]
    %v58 = vld [vmem:[#allocation2 + $0xd8] sm:$0xff]
    %v59 = vld [vmem:[#allocation2 + $0xe0] sm:$0xff]
    %v60 = vld [vmem:[#allocation2 + $0xe8] sm:$0xff]
    %v61 = vld [vmem:[#allocation2 + $0xf0] sm:$0xff]
    %v62 = vld [vmem:[#allocation2 + $0xf8] sm:$0xff]
    %v63 = vld [vmem:[#allocation2 + $0x100] sm:$0xff]
    %v64 = vld [vmem:[#allocation2 + $0x108] sm:$0xff]
    %v65 = vld [vmem:[#allocation2 + $0x110] sm:$0xff]
    %v66 = vld [vmem:[#allocation2 + $0x118] sm:$0xff]
    %v67 = vld [vmem:[#allocation2 + $0x120] sm:$0xff]
    %v68 = vld [vmem:[#allocation2 + $0x128] sm:$0xff]
    %v69 = vld [vmem:[#allocation2 + $0x130] sm:$0xff]
    %v70 = vld [vmem:[#allocation2 + $0x138] sm:$0xff]
    %v71 = vld [vmem:[#allocation2 + $0x140] sm:$0xff]
    %v72 = vld [vmem:[#allocation2 + $0x148] sm:$0xff]
    %v73 = vld [vmem:[#allocation2 + $0x150] sm:$0xff]
    %v74 = vld [vmem:[#allocation2 + $0x158] sm:$0xff]
    %v75 = vld [vmem:[#allocation2 + $0x160] sm:$0xff]
    %v76 = vld [vmem:[#allocation2 + $0x168] sm:$0xff]
    %v77 = vld [vmem:[#allocation2 + $0x170] sm:$0xff]
    %v78 = vld [vmem:[#allocation2 + $0x178] sm:$0xff]
    %v79 = vld [vmem:[#allocation2 + $0x180] sm:$0xff]
    %v80 = vld [vmem:[#allocation2 + $0x188] sm:$0xff]
    %v81 = vld [vmem:[#allocation2 + $0x190] sm:$0xff]
    %v82 = vld [vmem:[#allocation2 + $0x198] sm:$0xff]
    %v83 = vld [vmem:[#allocation2 + $0x1a0] sm:$0xff]
    %v84 = vld [vmem:[#allocation2 + $0x1a8] sm:$0xff]
    %v85 = vld [vmem:[#allocation2 + $0x1b0] sm:$0xff]
    %v86 = vld [vmem:[#allocation2 + $0x1b8] sm:$0xff]
    %v87 = vld [vmem:[#allocation2 + $0x1c0] sm:$0xff]
    %v88 = vld [vmem:[#allocation2 + $0x1c8] sm:$0xff]
    %v89 = vld [vmem:[#allocation2 + $0x1d0] sm:$0xff]
    %v90 = vld [vmem:[#allocation2 + $0x1d8] sm:$0xff]
    %v91 = vld [vmem:[#allocation2 + $0x1e0] sm:$0xff]
    %v92 = vld [vmem:[#allocation2 + $0x1e8] sm:$0xff]
    %v93 = vld [vmem:[#allocation2 + $0x1f0] sm:$0xff]
    %v94 = vld [vmem:[#allocation2 + $0x1f8] sm:$0xff]
    %v95 = vld [vmem:[#allocation2 + $0x200] sm:$0xff]
    %v96 = vld [vmem:[#allocation2 + $0x208] sm:$0xff]
    %v97 = vld [vmem:[#allocation2 + $0x210] sm:$0xff]
    %v98 = vld [vmem:[#allocation2 + $0x218] sm:$0xff]
    %v99 = vld [vmem:[#allocation2 + $0x220] sm:$0xff]
    %v100 = vld [vmem:[#allocation2 + $0x228] sm:$0xff]
    %v101 = vld [vmem:[#allocation2 + $0x230] sm:$0xff]
    %v102 = vld [vmem:[#allocation2 + $0x238] sm:$0xff]
    %v103 = vld [vmem:[#allocation2 + $0x240] sm:$0xff]
    %v104 = vld [vmem:[#allocation2 + $0x248] sm:$0xff]
    %v105 = vld [vmem:[#allocation2 + $0x250] sm:$0xff]
    %v106 = vld [vmem:[#allocation2 + $0x258] sm:$0xff]
    %v107 = vld [vmem:[#allocation2 + $0x260] sm:$0xff]
    %v108 = vld [vmem:[#allocation2 + $0x268] sm:$0xff]
    %v109 = vld [vmem:[#allocation2 + $0x270] sm:$0xff]
    %v110 = vld [vmem:[#allocation2 + $0x278] sm:$0xff]
    %v111 = vld [vmem:[#allocation2 + $0x280] sm:$0xff]
    %v112 = vld [vmem:[#allocation2 + $0x288] sm:$0xff]
    %v113 = vld [vmem:[#allocation2 + $0x290] sm:$0xff]
    %v114 = vld [vmem:[#allocation2 + $0x298] sm:$0xff]
    %v115 = vld [vmem:[%s2] sm:$0x1]
    %v116 = vlaneseq
    %v117 = vshrl.u32 %v116, 7
    %v118 = vsub.s32 0, %v117
    %v119 = vrot.slane %v115, %v118
    %v122 = vcombine.high %v29, %v29
    %v124 = vunpack.c.l.s4 1983009808
    %v125 = vunpack.c.0.s8 %v124
    %v126 = vlaneseq
    %v127 = vshrl.u32 %v126, 7
    %v128 = vsub.s32 %v125, %v127
    %v129 = vrot.slane %v29, %v128
    %v131 = vunpack.c.l.s4 1983009808
    %v132 = vunpack.c.0.s8 %v131
    %v133 = vlaneseq
    %v134 = vshrl.u32 %v133, 7
    %v135 = vsub.s32 %v132, %v134
    %v136 = vrot.slane %v122, %v135
    %v137 = vcombine.high %v129, %v129
    %v138 = vcombine.high %v136, %v136
    %v140 = vunpack.c.l.s4 1983009808
    %v141 = vunpack.c.0.s8 %v140
    %v142 = vlaneseq
    %v143 = vshrl.u32 %v142, 7
    %v144 = vsub.s32 %v141, %v143
    %v145 = vrot.slane %v30, %v144
    %v146 = vcombine.high %v145, %v145
    %vm152 = vcmask 261120
    %v153 = vsel %vm152, %v146, 0
    %155 = vmatprep.subr.mxu0 0.0
    %156 = vmatpush1.msra.mxu0 %v31
    %157 = vmatprep.subr.mxu0 0.0
    %158 = vmatpush1.msra.mxu0 %v32
    %159 = vmatprep.subr.mxu0 0.0
    %160 = vmatpush1.msra.mxu0 %v33
    %161 = vmatprep.subr.mxu0 0.0
    %162 = vmatpush1.msra.mxu0 %v34
    %163 = vmatprep.subr.mxu0 0.0
    %164 = vmatpush1.msra.mxu0 %v35
    %165 = vmatprep.subr.mxu0 0.0
    %166 = vmatpush1.msra.mxu0 %v36
    %167 = vmatprep.subr.mxu0 0.0
    %168 = vmatpush1.msra.mxu0 %v37
    %169 = vmatprep.subr.mxu0 0.0
    %170 = vmatpush1.msra.mxu0 %v38
    %171 = vmatprep.subr.mxu0 0.0
    %172 = vmatpush1.msra.mxu0 %v39
    %173 = vmatprep.subr.mxu0 0.0
    %174 = vmatpush1.msra.mxu0 %v40
    %175 = vmatprep.subr.mxu0 0.0
    %176 = vmatpush1.msra.mxu0 %v41
    %177 = vmatprep.subr.mxu0 0.0
    %178 = vmatpush1.msra.mxu0 %v42
    %179 = vmatprep.subr.mxu0 0.0
    %180 = vmatpush1.msra.mxu0 %v43
    %181 = vmatprep.subr.mxu0 0.0
    %182 = vmatpush1.msra.mxu0 %v44
    %183 = vmatprep.subr.mxu0 0.0
    %184 = vmatpush1.msra.mxu0 %v45
    %185 = vmatprep.subr.mxu0 0.0
    %186 = vmatpush1.msra.mxu0 %v46
    %187 = vmatprep.subr.mxu0 0.0
    %188 = vmatpush1.msra.mxu0 %v47
    %189 = vmatprep.subr.mxu0 0.0
    %190 = vmatpush1.msra.mxu0 %v48
    %191 = vmatprep.subr.mxu0 0.0
    %192 = vmatpush1.msra.mxu0 %v49
    %193 = vmatprep.subr.mxu0 0.0
    %194 = vmatpush1.msra.mxu0 %v50
    %195 = vmatprep.subr.mxu0 0.0
    %196 = vmatpush1.msra.mxu0 %v51
    %197 = vmatprep.subr.mxu0 0.0
    %198 = vmatpush1.msra.mxu0 %v52
    %199 = vmatprep.subr.mxu0 0.0
    %200 = vmatpush1.msra.mxu0 %v53
    %201 = vmatprep.subr.mxu0 0.0
    %202 = vmatpush1.msra.mxu0 %v54
    %203 = vmatprep.subr.mxu0 0.0
    %204 = vmatpush1.msra.mxu0 %v55
    %205 = vmatprep.subr.mxu0 0.0
    %206 = vmatpush1.msra.mxu0 %v56
    %207 = vmatprep.subr.mxu0 0.0
    %208 = vmatpush1.msra.mxu0 %v57
    %209 = vmatprep.subr.mxu0 0.0
    %210 = vmatpush1.msra.mxu0 %v58
    %211 = vmatprep.subr.mxu0 0.0
    %212 = vmatpush1.msra.mxu0 %v59
    %213 = vmatprep.subr.mxu0 0.0
    %214 = vmatpush1.msra.mxu0 %v60
    %215 = vmatprep.subr.mxu0 0.0
    %216 = vmatpush1.msra.mxu0 %v61
    %217 = vmatprep.subr.mxu0 0.0
    %218 = vmatpush1.msra.mxu0 %v62
    %219 = vmatprep.mubr.f32.mxu0 %v137
    %220 = vmatmul.mubr.f32.gmra.mrb[0].mxu0 %v129
    %v221 = vpop.f32.mrb[0].mxu0
    %v222 = vadd.f32 %v119, %v221
    %v223 = vpop.f32.mrb[0].mxu0
    %224 = vdwg.mxu0
    %225 = vmatprep.subr.mxu0 0.0
    %226 = vmatpush1.msra.mxu0 %v63
    %227 = vmatprep.subr.mxu0 0.0
    %228 = vmatpush1.msra.mxu0 %v64
    %229 = vmatprep.subr.mxu0 0.0
    %230 = vmatpush1.msra.mxu0 %v65
    %231 = vmatprep.subr.mxu0 0.0
    %232 = vmatpush1.msra.mxu0 %v66
    %233 = vmatprep.subr.mxu0 0.0
    %234 = vmatpush1.msra.mxu0 %v67
    %235 = vmatprep.subr.mxu0 0.0
    %236 = vmatpush1.msra.mxu0 %v68
    %237 = vmatprep.subr.mxu0 0.0
    %238 = vmatpush1.msra.mxu0 %v69
    %239 = vmatprep.subr.mxu0 0.0
    %240 = vmatpush1.msra.mxu0 %v70
    %241 = vmatprep.subr.mxu0 0.0
    %242 = vmatpush1.msra.mxu0 %v71
    %243 = vmatprep.subr.mxu0 0.0
    %244 = vmatpush1.msra.mxu0 %v72
    %245 = vmatprep.subr.mxu0 0.0
    %246 = vmatpush1.msra.mxu0 %v73
    %247 = vmatprep.subr.mxu0 0.0
    %248 = vmatpush1.msra.mxu0 %v74
    %249 = vmatprep.subr.mxu0 0.0
    %250 = vmatpush1.msra.mxu0 %v75
    %251 = vmatprep.subr.mxu0 0.0
    %252 = vmatpush1.msra.mxu0 %v76
    %253 = vmatprep.subr.mxu0 0.0
    %254 = vmatpush1.msra.mxu0 %v77
    %255 = vmatprep.subr.mxu0 0.0
    %256 = vmatpush1.msra.mxu0 %v78
    %257 = vmatprep.subr.mxu0 0.0
    %258 = vmatpush1.msra.mxu0 %v79
    %259 = vmatprep.subr.mxu0 0.0
    %260 = vmatpush1.msra.mxu0 %v80
    %261 = vmatprep.subr.mxu0 0.0
    %262 = vmatpush1.msra.mxu0 %v81
    %263 = vmatprep.subr.mxu0 0.0
    %264 = vmatpush1.msra.mxu0 %v82
    %265 = vmatprep.subr.mxu0 0.0
    %266 = vmatpush1.msra.mxu0 %v83
    %267 = vmatprep.subr.mxu0 0.0
    %268 = vmatpush1.msra.mxu0 %v84
    %269 = vmatprep.subr.mxu0 0.0
    %270 = vmatpush1.msra.mxu0 %v85
    %271 = vmatprep.subr.mxu0 0.0
    %272 = vmatpush1.msra.mxu0 %v86
    %273 = vmatprep.subr.mxu0 0.0
    %274 = vmatpush1.msra.mxu0 %v87
    %275 = vmatprep.subr.mxu0 0.0
    %276 = vmatpush1.msra.mxu0 %v88
    %277 = vmatprep.subr.mxu0 0.0
    %278 = vmatpush1.msra.mxu0 %v89
    %279 = vmatprep.subr.mxu0 0.0
    %280 = vmatpush1.msra.mxu0 %v90
    %281 = vmatprep.subr.mxu0 0.0
    %282 = vmatpush1.msra.mxu0 %v91
    %283 = vmatprep.subr.mxu0 0.0
    %284 = vmatpush1.msra.mxu0 %v92
    %285 = vmatprep.subr.mxu0 0.0
    %286 = vmatpush1.msra.mxu0 %v93
    %287 = vmatprep.subr.mxu0 0.0
    %288 = vmatpush1.msra.mxu0 %v94
    %289 = vmatprep.mubr.f32.mxu0 %v138
    %290 = vmatmul.mubr.f32.gmra.mrb[0].mxu0 %v136
    %v291 = vpop.f32.mrb[0].mxu0
    %v292 = vadd.f32 %v222, %v291
    %v293 = vpop.f32.mrb[0].mxu0
    %294 = vdwg.mxu0
    %295 = vmatprep.subr.mxu0 0.0
    %296 = vmatpush1.msra.mxu0 %v95
    %297 = vmatprep.subr.mxu0 0.0
    %298 = vmatpush1.msra.mxu0 %v96
    %299 = vmatprep.subr.mxu0 0.0
    %300 = vmatpush1.msra.mxu0 %v97
    %301 = vmatprep.subr.mxu0 0.0
    %302 = vmatpush1.msra.mxu0 %v98
    %303 = vmatprep.subr.mxu0 0.0
    %304 = vmatpush1.msra.mxu0 %v99
    %305 = vmatprep.subr.mxu0 0.0
    %306 = vmatpush1.msra.mxu0 %v100
    %307 = vmatprep.subr.mxu0 0.0
    %308 = vmatpush1.msra.mxu0 %v101
    %309 = vmatprep.subr.mxu0 0.0
    %310 = vmatpush1.msra.mxu0 %v102
    %311 = vmatprep.subr.mxu0 0.0
    %312 = vmatpush1.msra.mxu0 %v103
    %313 = vmatprep.subr.mxu0 0.0
    %314 = vmatpush1.msra.mxu0 %v104
    %315 = vmatprep.subr.mxu0 0.0
    %316 = vmatpush1.msra.mxu0 %v105
    %317 = vmatprep.subr.mxu0 0.0
    %318 = vmatpush1.msra.mxu0 %v106
    %319 = vmatprep.subr.mxu0 0.0
    %320 = vmatpush1.msra.mxu0 %v107
    %321 = vmatprep.subr.mxu0 0.0
    %322 = vmatpush1.msra.mxu0 %v108
    %323 = vmatprep.subr.mxu0 0.0
    %324 = vmatpush1.msra.mxu0 %v109
    %325 = vmatprep.subr.mxu0 0.0
    %326 = vmatpush1.msra.mxu0 %v110
    %327 = vmatprep.subr.mxu0 0.0
    %328 = vmatpush1.msra.mxu0 %v111
    %329 = vmatprep.subr.mxu0 0.0
    %330 = vmatpush1.msra.mxu0 %v112
    %331 = vmatprep.subr.mxu0 0.0
    %332 = vmatpush1.msra.mxu0 %v113
    %333 = vmatprep.subr.mxu0 0.0
    %334 = vmatpush1.msra.mxu0 %v114
    %335 = vmatprep.subr.mxu0 0.0
    %336 = vmatpush1.msra.mxu0 0.0
    %337 = vmatprep.subr.mxu0 0.0
    %338 = vmatpush1.msra.mxu0 0.0
    %339 = vmatprep.subr.mxu0 0.0
    %340 = vmatpush1.msra.mxu0 0.0
    %341 = vmatprep.subr.mxu0 0.0
    %342 = vmatpush1.msra.mxu0 0.0
    %343 = vmatprep.subr.mxu0 0.0
    %344 = vmatpush1.msra.mxu0 0.0
    %345 = vmatprep.subr.mxu0 0.0
    %346 = vmatpush1.msra.mxu0 0.0
    %347 = vmatprep.subr.mxu0 0.0
    %348 = vmatpush1.msra.mxu0 0.0
    %349 = vmatprep.subr.mxu0 0.0
    %350 = vmatpush1.msra.mxu0 0.0
    %351 = vmatprep.subr.mxu0 0.0
    %352 = vmatpush1.msra.mxu0 0.0
    %353 = vmatprep.subr.mxu0 0.0
    %354 = vmatpush1.msra.mxu0 0.0
    %355 = vmatprep.subr.mxu0 0.0
    %356 = vmatpush1.msra.mxu0 0.0
    %357 = vmatprep.subr.mxu0 0.0
    %358 = vmatpush1.msra.mxu0 0.0
    %359 = vmatprep.mubr.f32.mxu0 %v153
    %360 = vmatmul.mubr.f32.gmra.mrb[0].mxu0 %v145
    %v361 = vpop.f32.mrb[0].mxu0
    %v362 = vadd.f32 %v292, %v361
    %v363 = vpop.f32.mrb[0].mxu0
    %364 = vdwg.mxu0
    %v365 = vmax.f32 %v362, 0.0
    %v366 = vld [vmem:[#allocation2 + $0x2a0] sm:$0xff]
    %v367 = vld [vmem:[#allocation2 + $0x2a8] sm:$0xff]
    %v368 = vld [vmem:[#allocation2 + $0x2b0] sm:$0xff]
    %v369 = vld [vmem:[#allocation2 + $0x2b8] sm:$0xff]
    %v370 = vld [vmem:[#allocation2 + $0x2c0] sm:$0xff]
    %v371 = vld [vmem:[#allocation2 + $0x2c8] sm:$0xff]
    %v372 = vld [vmem:[#allocation2 + $0x2d0] sm:$0xff]
    %v373 = vld [vmem:[#allocation2 + $0x2d8] sm:$0xff]
    %v374 = vld [vmem:[#allocation2 + $0x2e0] sm:$0xff]
    %v375 = vld [vmem:[#allocation2 + $0x2e8] sm:$0xff]
    %v376 = vld [vmem:[#allocation2 + $0x2f0] sm:$0xff]
    %v377 = vld [vmem:[#allocation2 + $0x2f8] sm:$0xff]
    %v378 = vld [vmem:[#allocation2 + $0x300] sm:$0xff]
    %v379 = vld [vmem:[#allocation2 + $0x308] sm:$0xff]
    %v380 = vld [vmem:[#allocation2 + $0x310] sm:$0xff]
    %v381 = vld [vmem:[#allocation2 + $0x318] sm:$0xff]
    %v382 = vld [vmem:[%s2 + $0x1] sm:$0x1]
    %v383 = vlaneseq
    %v384 = vshrl.u32 %v383, 7
    %v385 = vsub.s32 0, %v384
    %v386 = vrot.slane %v382, %v385
    %387 = vmatprep.subr.mxu0 0.0
    %388 = vmatpush1.msra.mxu0 %v366
    %389 = vmatprep.subr.mxu0 0.0
    %390 = vmatpush1.msra.mxu0 %v367
    %391 = vmatprep.subr.mxu0 0.0
    %392 = vmatpush1.msra.mxu0 %v368
    %393 = vmatprep.subr.mxu0 0.0
    %394 = vmatpush1.msra.mxu0 %v369
    %395 = vmatprep.subr.mxu0 0.0
    %396 = vmatpush1.msra.mxu0 %v370
    %397 = vmatprep.subr.mxu0 0.0
    %398 = vmatpush1.msra.mxu0 %v371
    %399 = vmatprep.subr.mxu0 0.0
    %400 = vmatpush1.msra.mxu0 %v372
    %401 = vmatprep.subr.mxu0 0.0
    %402 = vmatpush1.msra.mxu0 %v373
    %403 = vmatprep.subr.mxu0 0.0
    %404 = vmatpush1.msra.mxu0 %v374
    %405 = vmatprep.subr.mxu0 0.0
    %406 = vmatpush1.msra.mxu0 %v375
    %407 = vmatprep.subr.mxu0 0.0
    %408 = vmatpush1.msra.mxu0 %v376
    %409 = vmatprep.subr.mxu0 0.0
    %410 = vmatpush1.msra.mxu0 %v377
    %411 = vmatprep.subr.mxu0 0.0
    %412 = vmatpush1.msra.mxu0 %v378
    %413 = vmatprep.subr.mxu0 0.0
    %414 = vmatpush1.msra.mxu0 %v379
    %415 = vmatprep.subr.mxu0 0.0
    %416 = vmatpush1.msra.mxu0 %v380
    %417 = vmatprep.subr.mxu0 0.0
    %418 = vmatpush1.msra.mxu0 %v381
    %419 = vmatprep.subr.mxu0 0.0
    %420 = vmatpush1.msra.mxu0 0.0
    %421 = vmatprep.subr.mxu0 0.0
    %422 = vmatpush1.msra.mxu0 0.0
    %423 = vmatprep.subr.mxu0 0.0
    %424 = vmatpush1.msra.mxu0 0.0
    %425 = vmatprep.subr.mxu0 0.0
    %426 = vmatpush1.msra.mxu0 0.0
    %427 = vmatprep.subr.mxu0 0.0
    %428 = vmatpush1.msra.mxu0 0.0
    %429 = vmatprep.subr.mxu0 0.0
    %430 = vmatpush1.msra.mxu0 0.0
    %431 = vmatprep.subr.mxu0 0.0
    %432 = vmatpush1.msra.mxu0 0.0
    %433 = vmatprep.subr.mxu0 0.0
    %434 = vmatpush1.msra.mxu0 0.0
    %435 = vmatprep.subr.mxu0 0.0
    %436 = vmatpush1.msra.mxu0 0.0
    %437 = vmatprep.subr.mxu0 0.0
    %438 = vmatpush1.msra.mxu0 0.0
    %439 = vmatprep.subr.mxu0 0.0
    %440 = vmatpush1.msra.mxu0 0.0
    %441 = vmatprep.subr.mxu0 0.0
    %442 = vmatpush1.msra.mxu0 0.0
    %443 = vmatprep.subr.mxu0 0.0
    %444 = vmatpush1.msra.mxu0 0.0
    %445 = vmatprep.subr.mxu0 0.0
    %446 = vmatpush1.msra.mxu0 0.0
    %447 = vmatprep.subr.mxu0 0.0
    %448 = vmatpush1.msra.mxu0 0.0
    %449 = vmatprep.subr.mxu0 0.0
    %450 = vmatpush1.msra.mxu0 0.0
    %451 = vmatprep.mubr.f32.mxu0 0.0
    %452 = vmatmul.mubr.f32.gmra.mrb[0].mxu0 %v365
    %v453 = vpop.f32.mrb[0].mxu0
    %v454 = vadd.f32 %v386, %v453
    %v455 = vpop.f32.mrb[0].mxu0
    %456 = vdwg.mxu0
    %457 = vst [vmem:[#allocation5] sm:$0x3] %v454
    // Predicated region
    $region18: #{moby_mlp_flattern_forward.1} parent=1 // pred_check
      _
    $region19: #{moby_mlp_flattern_forward.1} parent=1 // pred_check_branch
      %459 = sbr.rel (0) target = $region21
    $region20: #{moby_mlp_flattern_forward.1} parent=1 // pred_region
      %s461 = ssub.s32 32, 32
      %462 = vsyncadd [#allocation4], %s461
      %s464 = sshll.u32 [#allocation5], 4
      %s465 = int_to_ptr.vmem [resolvable:$true] %s464
      %467 = dma.vmem_to_hbm [thread:$0]  %s465, 32, %s3, [#allocation4]
    $region21: #{moby_mlp_flattern_forward.1} parent=1 // pred_fallthru
      _
    // Predicated region
    $region22: #{moby_mlp_flattern_forward.1} parent=1 // pred_check
      _
    $region23: #{moby_mlp_flattern_forward.1} parent=1 // pred_check_branch
      %469 = sbr.rel (0) target = $region25
    $region24: #{moby_mlp_flattern_forward.1} parent=1 // pred_region
      %470 = dma.done [#allocation4], 32
    $region25: #{moby_mlp_flattern_forward.1} parent=1 // pred_fallthru
      _
    %471 = vsyncpa [#allocation3], 1
    %472 = vsyncpa [#allocation4], 1

</llo_original>
